<compile_context>
chip_gen: v7x
topology: tpu7x:2x2x1
jax: 0.10.0
libtpu: 0.0.40
codegen_flags: <defaults>
</compile_context>

<pallas_src>
import functools

import jax
import jax.numpy as jnp
from jax.experimental import pallas as pl
from jax.experimental.pallas import tpu as pltpu

EPS = 1e-5
ROW_TILE = 512          # base number of flattened output rows per grid step
IN_FUSED_MAX_F32_BYTES = 2 * 1024 * 1024   # fused instance-norm slab limit


def _round_up(x, m):
    return (x + m - 1) // m * m


def _apply_act(y, activation):
    if activation == "relu":
        return jnp.maximum(y, 0.0)
    if activation == "leaky":
        return jnp.where(y >= 0.0, y, 0.2 * y)   # module uses LeakyReLU(0.2)
    if activation == "tanh":
        return jnp.tanh(y)
    return y


# ---------------------------------------------------------------------------
# Pallas kernel 1: multi-tap conv as shifted-matmul accumulation (fused
# bias + activation).  One grid step = `tm` flattened output rows.
# ---------------------------------------------------------------------------
def _conv_taps_kernel(a_ref, b_ref, w_ref, bias_ref, o_ref, *,
                      offsets, tm, activation):
    """
    a_ref:    (tm, Kc)        bf16  rows [i*tm, (i+1)*tm) of flattened input
    b_ref:    (tb, Kc)        bf16  halo rows [(i+1)*tm, (i+1)*tm + tb)
    w_ref:    (G*T, Kc, Cout) bf16  per-(group, tap) weight matrices
    bias_ref: (1, Cout)       f32
    o_ref:    (tm, G*Cout)    bf16
    """
    xw = jnp.concatenate([a_ref[...], b_ref[...]], axis=0)     # (tm+tb, Kc)
    kc = xw.shape[1]
    ntaps = len(offsets[0])
    bias = bias_ref[...]
    outs = []
    for g, taps in enumerate(offsets):
        acc = None
        for j, d in enumerate(taps):                 # d: static row shift
            xs = jax.lax.slice(xw, (d, 0), (d + tm, kc))
            p = jnp.dot(xs, w_ref[g * ntaps + j],
                        preferred_element_type=jnp.float32)
            acc = p if acc is None else acc + p
        acc = _apply_act(acc + bias, activation)
        outs.append(acc.astype(o_ref.dtype))
    # One lane-dense store per tile (avoid masked partial-column stores).
    o_ref[...] = outs[0] if len(outs) == 1 else jnp.concatenate(outs, axis=1)


def _pick_tiles(n_rows, d_max):
    tm = min(ROW_TILE, _round_up(n_rows, 16))
    tm = max(tm, _round_up(max(d_max, 1), 16))       # window must fit: d <= tb <= tm
    tb = tm
    for cand in (tm // 8, tm // 4, tm // 2):
        if cand >= d_max and cand % 16 == 0 and tm % cand == 0:
            tb = cand
            break
    return tm, tb


def _conv_rows(xp, w_taps, bias, offsets, activation):
    """Stride-1 multi-tap conv on a channels-last padded image.

    xp:      [B, Hp, Wp, Kc] bf16 (already 'same'-padded)
    w_taps:  [G*T, Kc, Cout] bf16
    bias:    [1, Cout] f32
    offsets: G lists of T flattened-row offsets (units of Wp)
    Returns the *uncropped* [B, Hp, Wp, G*Cout]; rows/cols beyond the valid
    output extent hold wrapped garbage that the caller crops off.
    """
    B, Hp, Wp, Kc = xp.shape
    GT, _, Cout = w_taps.shape
    G = len(offsets)
    n_rows = B * Hp * Wp
    d_max = max(max(t) for t in offsets)
    tm, tb = _pick_tiles(n_rows, d_max)
    nblk = pl.cdiv(n_rows, tm)
    step = tm // tb

    xf = xp.reshape(n_rows, Kc)
    xf = jnp.pad(xf, ((0, nblk * tm + tb - n_rows), (0, 0)))

    out = pl.pallas_call(
        functools.partial(_conv_taps_kernel, offsets=offsets, tm=tm,
                          activation=activation),
        out_shape=jax.ShapeDtypeStruct((nblk * tm, G * Cout), jnp.bfloat16),
        grid=(nblk,),
        in_specs=[
            pl.BlockSpec((tm, Kc), lambda i: (i, 0)),
            pl.BlockSpec((tb, Kc), lambda i: ((i + 1) * step, 0)),
            pl.BlockSpec((GT, Kc, Cout), lambda i: (0, 0, 0)),
            pl.BlockSpec((1, Cout), lambda i: (0, 0)),
        ],
        out_specs=pl.BlockSpec((tm, G * Cout), lambda i: (i, 0)),
        compiler_params=pltpu.CompilerParams(
            dimension_semantics=("parallel",)),
    )(xf, xf, w_taps, bias)
    return out[:n_rows].reshape(B, Hp, Wp, G * Cout)


# ---------------------------------------------------------------------------
# Pallas kernels 2: InstanceNorm2d(affine=False) + activation, channels-last.
#   Fast path: stats + normalize + activation fused in ONE kernel per batch
#   element (single HBM read + single HBM write) whenever the (S, C) slab
#   fits in VMEM.  Fallback: two blocked passes for very large feature maps.
# ---------------------------------------------------------------------------
def _in_fused_kernel(x_ref, o_ref, *, inv_n, eps, activation):
    x = x_ref[0].astype(jnp.float32)                           # (S, C)
    m = jnp.sum(x, axis=0, keepdims=True) * inv_n
    xc = x - m
    var = jnp.sum(xc * xc, axis=0, keepdims=True) * inv_n
    y = xc * jax.lax.rsqrt(var + eps)
    o_ref[0] = _apply_act(y, activation).astype(o_ref.dtype)


def _in_stats_kernel(x_ref, mean_ref, rstd_ref, *, ts, n_valid, eps):
    s = pl.program_id(1)

    @pl.when(s == 0)
    def _():
        mean_ref[...] = jnp.zeros_like(mean_ref)
        rstd_ref[...] = jnp.zeros_like(rstd_ref)

    x = x_ref[0].astype(jnp.float32)                           # (ts, C)
    row = jax.lax.broadcasted_iota(jnp.int32, (ts, 1), 0) + s * ts
    x = jnp.where(row < n_valid, x, 0.0)                       # mask ragged tail
    mean_ref[...] += jnp.sum(x, axis=0, keepdims=True)[None]   # running sum
    rstd_ref[...] += jnp.sum(x * x, axis=0, keepdims=True)[None]

    @pl.when(s == pl.num_programs(1) - 1)
    def _():
        inv_n = 1.0 / n_valid
        m = mean_ref[...] * inv_n
        var = jnp.maximum(rstd_ref[...] * inv_n - m * m, 0.0)
        mean_ref[...] = m
        rstd_ref[...] = jax.lax.rsqrt(var + eps)


def _in_apply_kernel(x_ref, mean_ref, rstd_ref, o_ref, *, activation):
    x = x_ref[0].astype(jnp.float32)                           # (ts, C)
    y = (x - mean_ref[0]) * rstd_ref[0]
    o_ref[0] = _apply_act(y, activation).astype(o_ref.dtype)


def instance_norm_act(x, activation, *, force_two_pass=False):
    """x: [B, H, W, C] channels-last -> per-(b,c) spatial norm, then act."""
    B, H, W, C = x.shape
    S = H * W
    x2 = x.reshape(B, S, C)

    if not force_two_pass and S * C * 4 <= IN_FUSED_MAX_F32_BYTES:
        y = pl.pallas_call(
            functools.partial(_in_fused_kernel, inv_n=1.0 / S, eps=EPS,
                              activation=activation),
            out_shape=jax.ShapeDtypeStruct((B, S, C), x.dtype),
            grid=(B,),
            in_specs=[pl.BlockSpec((1, S, C), lambda b: (b, 0, 0))],
            out_specs=pl.BlockSpec((1, S, C), lambda b: (b, 0, 0)),
            compiler_params=pltpu.CompilerParams(
                dimension_semantics=("parallel",)),
        )(x2)
        return y.reshape(B, H, W, C)

    ts = S if S <= 1024 else 1024
    ns = pl.cdiv(S, ts)

    mean, rstd = pl.pallas_call(
        functools.partial(_in_stats_kernel, ts=ts, n_valid=S, eps=EPS),
        out_shape=(jax.ShapeDtypeStruct((B, 1, C), jnp.float32),
                   jax.ShapeDtypeStruct((B, 1, C), jnp.float32)),
        grid=(B, ns),
        in_specs=[pl.BlockSpec((1, ts, C), lambda b, s: (b, s, 0))],
        out_specs=(pl.BlockSpec((1, 1, C), lambda b, s: (b, 0, 0)),
                   pl.BlockSpec((1, 1, C), lambda b, s: (b, 0, 0))),
        compiler_params=pltpu.CompilerParams(
            dimension_semantics=("parallel", "arbitrary")),
    )(x2)

    y = pl.pallas_call(
        functools.partial(_in_apply_kernel, activation=activation),
        out_shape=jax.ShapeDtypeStruct((B, S, C), x.dtype),
        grid=(B, ns),
        in_specs=[pl.BlockSpec((1, ts, C), lambda b, s: (b, s, 0)),
                  pl.BlockSpec((1, 1, C), lambda b, s: (b, 0, 0)),
                  pl.BlockSpec((1, 1, C), lambda b, s: (b, 0, 0))],
        out_specs=pl.BlockSpec((1, ts, C), lambda b, s: (b, s, 0)),
        compiler_params=pltpu.CompilerParams(
            dimension_semantics=("parallel", "parallel")),
    )(x2, mean, rstd)
    return y.reshape(B, H, W, C)


# ---------------------------------------------------------------------------
# ConvBlock equivalents (channels-last), matching the PyTorch 'same' padding.
# ---------------------------------------------------------------------------
def conv_block_s2(x, layer, activation):
    """nn.Conv2d ksize=4 stride=2 'same' via space-to-depth + 2x2-tap kernel."""
    B, H, W, C = x.shape
    ho, wo = H // 2, W // 2
    xp = jnp.pad(x, ((0, 0), (1, 1), (1, 1), (0, 0)))          # pad = 1 each side
    hz, wz = (H + 2) // 2, (W + 2) // 2
    z = xp.reshape(B, hz, 2, wz, 2, C).transpose(0, 1, 3, 2, 4, 5)
    z = z.reshape(B, hz, wz, 4 * C)
    offsets = [[qy * wz + qx for qy in range(2) for qx in range(2)]]
    out = _conv_rows(z, layer["w_taps"], layer["bias"], offsets, activation)
    return out[:, :ho, :wo, :]


def conv_block_s1(x, layer, k, activation):
    """nn.Conv2d ksize=k (odd) stride=1 'same'."""
    B, H, W, C = x.shape
    p = (k - 1) // 2
    xp = jnp.pad(x, ((0, 0), (p, p), (p, p), (0, 0)))
    wp = W + 2 * p
    offsets = [[dy * wp + dx for dy in range(k) for dx in range(k)]]
    out = _conv_rows(xp, layer["w_taps"], layer["bias"], offsets, activation)
    return out[:, :H, :W, :]


def conv_block_transpose_s2(x, layer, activation):
    """nn.ConvTranspose2d ksize=4 stride=2 (+ center crop to 2H x 2W) via the
    subpixel decomposition: 4 parity groups of 2x2 taps in one kernel."""
    B, H, W, C = x.shape
    cout = layer["bias"].shape[-1]
    xp = jnp.pad(x, ((0, 0), (1, 1), (1, 1), (0, 0)))
    wp = W + 2
    offsets = [[(py + dy) * wp + (px + dx)
                for dy in range(2) for dx in range(2)]
               for py in range(2) for px in range(2)]
    out = _conv_rows(xp, layer["w_taps"], layer["bias"], offsets, activation)
    o = out[:, :H, :W, :].reshape(B, H, W, 2, 2, cout)
    o = o.transpose(0, 1, 3, 2, 4, 5).reshape(B, 2 * H, 2 * W, cout)
    return o


# ---------------------------------------------------------------------------
# One-time weight re-layout (torch layouts -> per-tap [K, Cout] bf16 matrices)
# ---------------------------------------------------------------------------
def _prep_conv_s2_weight(w):
    """torch Conv2d [Cout, Cin, 4, 4] -> [4 taps, 4*Cin, Cout] bf16."""
    cout, cin = w.shape[0], w.shape[1]
    w6 = w.reshape(cout, cin, 2, 2, 2, 2)            # (co, ci, qy, ry, qx, rx)
    w6 = jnp.transpose(w6, (2, 4, 3, 5, 1, 0))       # (qy, qx, ry, rx, ci, co)
    return w6.reshape(4, 4 * cin, cout).astype(jnp.bfloat16)


def _prep_conv_s1_weight(w):
    """torch Conv2d [Cout, Cin, k, k] -> [k*k taps, Cin, Cout] bf16."""
    cout, cin, k, _ = w.shape
    wt = jnp.transpose(w, (2, 3, 1, 0)).reshape(k * k, cin, cout)
    return wt.astype(jnp.bfloat16)


def _prep_convT_weight(w):
    """torch ConvTranspose2d [Cin, Cout, 4, 4] -> [16, Cin, Cout] bf16,
    ordered (parity_y, parity_x, dy, dx)."""
    mats = []
    for py in range(2):
        for px in range(2):
            for dy in range(2):
                for dx in range(2):
                    mats.append(w[:, :, 3 - py - 2 * dy, 3 - px - 2 * dx])
    return jnp.stack(mats, axis=0).astype(jnp.bfloat16)


# ---------------------------------------------------------------------------
# kp2uv parameters + forward
# ---------------------------------------------------------------------------
def make_kp2uv_params(key, nf=8):
    # spec: (kind, Cin, Cout, k, s, norm, activation)
    enc = [
        ("conv", 3, nf, 4, 2, False, "relu"),
        ("conv", nf, 2 * nf, 4, 2, True, "leaky"),
        ("conv", 2 * nf, 4 * nf, 4, 2, True, "leaky"),
        ("conv", 4 * nf, 4 * nf, 4, 2, True, "leaky"),
        ("conv", 4 * nf, 4 * nf, 4, 2, True, "leaky"),
        ("conv", 4 * nf, 4 * nf, 3, 1, True, "leaky"),
        ("conv", 4 * nf, 4 * nf, 3, 1, True, "leaky"),
    ]
    dec = [
        ("convT", 8 * nf, 4 * nf, 4, 2, True, "relu"),
        ("convT", 8 * nf, 4 * nf, 4, 2, True, "relu"),
        ("convT", 8 * nf, 2 * nf, 4, 2, True, "relu"),
        ("convT", 4 * nf, nf, 4, 2, True, "relu"),
        ("convT", 2 * nf, nf, 4, 2, True, "relu"),
    ]
    heads = [
        ("conv", nf + 3, 25, 3, 1, False, "none"),      # id_pred
        ("conv", nf + 3, 48, 3, 1, False, "tanh"),      # uv_pred (2 * 24)
    ]

    def init_layer(k_, spec):
        kind, cin, cout, ks, s, norm, act = spec
        kw, kb = jax.random.split(k_)
        if kind == "conv":
            w = jax.random.normal(kw, (cout, cin, ks, ks), jnp.float32) * 0.05
            w_taps = (_prep_conv_s2_weight(w) if s == 2
                      else _prep_conv_s1_weight(w))
        else:   # torch ConvTranspose2d layout: [Cin, Cout, kh, kw]
            w = jax.random.normal(kw, (cin, cout, ks, ks), jnp.float32) * 0.05
            w_taps = _prep_convT_weight(w)
        b = jax.random.normal(kb, (cout,), jnp.float32) * 0.01
        return {"w_taps": w_taps, "bias": b.reshape(1, cout), "spec": spec}

    specs = enc + dec + heads
    keys = jax.random.split(key, len(specs))
    layers = [init_layer(kk, sp) for kk, sp in zip(keys, specs)]
    return {
        "encoder": layers[:len(enc)],
        "decoder": layers[len(enc):len(enc) + len(dec)],
        "id_pred": layers[-2],
        "uv_pred": layers[-1],
    }


def _apply(layer, x):
    kind, _, _, k, s, norm, act = layer["spec"]
    inner_act = "none" if norm else act
    if kind == "conv":
        y = (conv_block_s2(x, layer, inner_act) if s == 2
             else conv_block_s1(x, layer, k, inner_act))
    else:
        y = conv_block_transpose_s2(x, layer, inner_act)
    if norm:
        y = instance_norm_act(y, act)
    return y


def kp2uv_forward(params, x_nchw):
    """x_nchw: [B, 3, H, W] (H, W divisible by 32) ->
       (x_id [B, 25, H, W], x_uv [B, 48, H, W]) float32 NCHW."""
    x = jnp.transpose(x_nchw, (0, 2, 3, 1)).astype(jnp.bfloat16)   # -> NHWC
    skips = [x]
    for i, layer in enumerate(params["encoder"]):
        x = _apply(layer, x)
        if i < 5:
            skips.append(x)
    for layer in params["decoder"]:
        x = jnp.concatenate((x, skips.pop()), axis=-1)
        x = _apply(layer, x)
    x = jnp.concatenate((x, skips.pop()), axis=-1)
    x_id = _apply(params["id_pred"], x)
    x_uv = _apply(params["uv_pred"], x)
    to_nchw = lambda t: jnp.transpose(t, (0, 3, 1, 2)).astype(jnp.float32)
    return to_nchw(x_id), to_nchw(x_uv)


# ---------------------------------------------------------------------------
# Self-test: validate the Pallas lowerings against jax.lax references.
# ---------------------------------------------------------------------------
def _selftest(key):
    kx, kw, kb, kt = jax.random.split(key, 4)
    B, H, W, cin, cout = 2, 12, 16, 8, 16
    x = jax.random.normal(kx, (B, H, W, cin), jnp.float32)
    xb = x.astype(jnp.bfloat16)
    dn = ("NHWC", "HWIO", "NHWC")
    b = jax.random.normal(kb, (cout,), jnp.float32) * 0.01

    def check(got, ref, name):
        err = float(jnp.max(jnp.abs(got.astype(jnp.float32) - ref)))
        assert err < 5e-2, (name, err)

    # Conv2d k=4 s=2 ('same')
    w = jax.random.normal(kw, (cout, cin, 4, 4), jnp.float32) * 0.05
    layer = {"w_taps": _prep_conv_s2_weight(w), "bias": b.reshape(1, cout)}
    got = conv_block_s2(xb, layer, "none")
    xp = jnp.pad(x, ((0, 0), (1, 1), (1, 1), (0, 0)))
    ref = jax.lax.conv_general_dilated(
        xp, jnp.transpose(w, (2, 3, 1, 0)), (2, 2), "VALID",
        dimension_numbers=dn) + b
    check(got, ref, "conv k4 s2")

    # Conv2d k=3 s=1 ('same')
    w3 = jax.random.normal(kw, (cout, cin, 3, 3), jnp.float32) * 0.05
    layer = {"w_taps": _prep_conv_s1_weight(w3), "bias": b.reshape(1, cout)}
    got = conv_block_s1(xb, layer, 3, "none")
    ref = jax.lax.conv_general_dilated(
        xp, jnp.transpose(w3, (2, 3, 1, 0)), (1, 1), "VALID",
        dimension_numbers=dn) + b
    check(got, ref, "conv k3 s1")

    # ConvTranspose2d k=4 s=2 (+ center crop), torch weight layout [Cin,Cout,4,4]
    wt = jax.random.normal(kt, (cin, cout, 4, 4), jnp.float32) * 0.05
    layer = {"w_taps": _prep_convT_weight(wt), "bias": b.reshape(1, cout)}
    got = conv_block_transpose_s2(xb, layer, "none")
    rhs = jnp.transpose(jnp.flip(wt, (2, 3)), (2, 3, 0, 1))   # flipped, HWIO
    full = jax.lax.conv_general_dilated(
        x, rhs, (1, 1), [(3, 3), (3, 3)], lhs_dilation=(2, 2),
        dimension_numbers=dn) + b
    check(got, full[:, 1:-1, 1:-1, :], "convT k4 s2")

    # InstanceNorm2d(affine=False) + leaky: test both fused and two-pass paths
    m = jnp.mean(x, axis=(1, 2), keepdims=True)
    v = jnp.mean((x - m) ** 2, axis=(1, 2), keepdims=True)
    ref = (x - m) * jax.lax.rsqrt(v + EPS)
    ref = jnp.where(ref >= 0, ref, 0.2 * ref)
    got = instance_norm_act(xb, "leaky")                       # fused path
    check(got, ref, "instance norm (fused)")
    got = instance_norm_act(xb, "leaky", force_two_pass=True)  # blocked path
    check(got, ref, "instance norm (two-pass)")


if __name__ == "__main__":
    key = jax.random.PRNGKey(0)
    k_test, k_params, k_x = jax.random.split(key, 3)

    _selftest(k_test)

    nf = 8               # module default is 64; small nf for the synthetic test
    B, H, W = 2, 64, 64  # H, W must be divisible by 2**5 (five stride-2 stages)
    params = make_kp2uv_params(k_params, nf=nf)
    x = jax.random.normal(k_x, (B, 3, H, W), jnp.float32)

    fwd = jax.jit(functools.partial(kp2uv_forward, params))
    x_id, x_uv = fwd(x)
    x_id = jax.block_until_ready(x_id)
    x_uv = jax.block_until_ready(x_uv)

    assert x_id.shape == (B, 25, H, W), x_id.shape
    assert x_uv.shape == (B, 48, H, W), x_uv.shape
    assert bool(jnp.all(jnp.isfinite(x_id))) and bool(jnp.all(jnp.isfinite(x_uv)))
    assert float(jnp.max(jnp.abs(x_uv))) <= 1.0 + 1e-6   # uv head is tanh-bounded

    print("KERNEL_OK")
</pallas_src>

<mosaic_0001>
module attributes {stable_mosaic.version = 11 : i64} {
  func.func @_conv_taps_kernel(%arg0: i32, %arg1: memref<128x32xbf16, #tpu.memory_space<vmem>>, %arg2: memref<16x32xbf16, #tpu.memory_space<vmem>>, %arg3: memref<4x32x16xbf16, #tpu.memory_space<vmem>>, %arg4: memref<1x16xf32, #tpu.memory_space<vmem>>, %arg5: memref<128x16xbf16, #tpu.memory_space<vmem>>) attributes {dimension_semantics = [#tpu.dimension_semantics<parallel>], iteration_bounds = array<i64: 1>, scalar_prefetch = 0 : i64, scratch_operands = 0 : i64, tpu.core_type = #tpu.core_type<tc>, window_params = [{transform_indices = @transform_0, window_bounds = array<i64: 128, 32>}, {transform_indices = @transform_1, window_bounds = array<i64: 16, 32>}, {pipeline_mode = #tpu.pipeline_mode<synchronous>, transform_indices = @transform_2, window_bounds = array<i64: 4, 32, 16>}, {pipeline_mode = #tpu.pipeline_mode<synchronous>, transform_indices = @transform_3, window_bounds = array<i64: 1, 16>}, {transform_indices = @transform_4, window_bounds = array<i64: 128, 16>}]} {
    %c0 = arith.constant 0 : index
    %c0_0 = arith.constant 0 : index
    %0 = vector.load %arg1[%c0, %c0_0] : memref<128x32xbf16, #tpu.memory_space<vmem>>, vector<128x32xbf16>
    %c0_1 = arith.constant 0 : index
    %c0_2 = arith.constant 0 : index
    %1 = vector.load %arg2[%c0_1, %c0_2] : memref<16x32xbf16, #tpu.memory_space<vmem>>, vector<16x32xbf16>
    %2 = tpu.concatenate %0, %1 in 0 : vector<128x32xbf16>, vector<16x32xbf16> -> vector<144x32xbf16>
    %c0_3 = arith.constant 0 : index
    %c0_4 = arith.constant 0 : index
    %3 = vector.load %arg4[%c0_3, %c0_4] : memref<1x16xf32, #tpu.memory_space<vmem>>, vector<1x16xf32>
    %4 = vector.extract_strided_slice %2 {offsets = [0, 0], sizes = [128, 32], strides = [1, 1]} : vector<144x32xbf16> to vector<128x32xbf16>
    %c0_5 = arith.constant 0 : index
    %c0_6 = arith.constant 0 : index
    %c0_7 = arith.constant 0 : index
    %5 = vector.load %arg3[%c0_5, %c0_6, %c0_7] : memref<4x32x16xbf16, #tpu.memory_space<vmem>>, vector<1x32x16xbf16>
    %6 = vector.shape_cast %5 : vector<1x32x16xbf16> to vector<32x16xbf16>
    %cst = arith.constant dense<0.000000e+00> : vector<128x16xf32>
    %7 = tpu.matmul %4, %6, %cst {dimension_numbers = #tpu.dot_dimension_numbers<[1], [0], [0], [1], [0, 0, 1, 1], [], []>} : vector<128x32xbf16>, vector<32x16xbf16>, vector<128x16xf32> -> vector<128x16xf32>
    %8 = vector.extract_strided_slice %2 {offsets = [1, 0], sizes = [128, 32], strides = [1, 1]} : vector<144x32xbf16> to vector<128x32xbf16>
    %c1 = arith.constant 1 : index
    %c0_8 = arith.constant 0 : index
    %c0_9 = arith.constant 0 : index
    %9 = vector.load %arg3[%c1, %c0_8, %c0_9] : memref<4x32x16xbf16, #tpu.memory_space<vmem>>, vector<1x32x16xbf16>
    %10 = vector.shape_cast %9 : vector<1x32x16xbf16> to vector<32x16xbf16>
    %cst_10 = arith.constant dense<0.000000e+00> : vector<128x16xf32>
    %11 = tpu.matmul %8, %10, %cst_10 {dimension_numbers = #tpu.dot_dimension_numbers<[1], [0], [0], [1], [0, 0, 1, 1], [], []>} : vector<128x32xbf16>, vector<32x16xbf16>, vector<128x16xf32> -> vector<128x16xf32>
    %12 = arith.addf %7, %11 : vector<128x16xf32>
    %13 = vector.extract_strided_slice %2 {offsets = [9, 0], sizes = [128, 32], strides = [1, 1]} : vector<144x32xbf16> to vector<128x32xbf16>
    %c2 = arith.constant 2 : index
    %c0_11 = arith.constant 0 : index
    %c0_12 = arith.constant 0 : index
    %14 = vector.load %arg3[%c2, %c0_11, %c0_12] : memref<4x32x16xbf16, #tpu.memory_space<vmem>>, vector<1x32x16xbf16>
    %15 = vector.shape_cast %14 : vector<1x32x16xbf16> to vector<32x16xbf16>
    %cst_13 = arith.constant dense<0.000000e+00> : vector<128x16xf32>
    %16 = tpu.matmul %13, %15, %cst_13 {dimension_numbers = #tpu.dot_dimension_numbers<[1], [0], [0], [1], [0, 0, 1, 1], [], []>} : vector<128x32xbf16>, vector<32x16xbf16>, vector<128x16xf32> -> vector<128x16xf32>
    %17 = arith.addf %12, %16 : vector<128x16xf32>
    %18 = vector.extract_strided_slice %2 {offsets = [10, 0], sizes = [128, 32], strides = [1, 1]} : vector<144x32xbf16> to vector<128x32xbf16>
    %c3 = arith.constant 3 : index
    %c0_14 = arith.constant 0 : index
    %c0_15 = arith.constant 0 : index
    %19 = vector.load %arg3[%c3, %c0_14, %c0_15] : memref<4x32x16xbf16, #tpu.memory_space<vmem>>, vector<1x32x16xbf16>
    %20 = vector.shape_cast %19 : vector<1x32x16xbf16> to vector<32x16xbf16>
    %cst_16 = arith.constant dense<0.000000e+00> : vector<128x16xf32>
    %21 = tpu.matmul %18, %20, %cst_16 {dimension_numbers = #tpu.dot_dimension_numbers<[1], [0], [0], [1], [0, 0, 1, 1], [], []>} : vector<128x32xbf16>, vector<32x16xbf16>, vector<128x16xf32> -> vector<128x16xf32>
    %22 = arith.addf %17, %21 : vector<128x16xf32>
    %23 = vector.broadcast %3 : vector<1x16xf32> to vector<128x16xf32>
    %24 = arith.addf %22, %23 : vector<128x16xf32>
    %25 = arith.truncf %24 : vector<128x16xf32> to vector<128x16xbf16>
    %c0_17 = arith.constant 0 : index
    %c0_18 = arith.constant 0 : index
    %26 = vector.load %arg5[%c0_17, %c0_18] : memref<128x16xbf16, #tpu.memory_space<vmem>>, vector<128x16xbf16>
    tpu.vector_store %arg5[%c0_17, %c0_18], %25 {strides = array<i32>} : memref<128x16xbf16, #tpu.memory_space<vmem>>, vector<128x16xbf16>,
    return
  }
  func.func @transform_0(%arg0: i32) -> (i32, i32) {
    %c0_i32 = arith.constant 0 : i32
    %c0_i32_0 = arith.constant 0 : i32
    return %arg0, %c0_i32 : i32, i32
  }
  func.func @transform_1(%arg0: i32) -> (i32, i32) {
    %c1_i32 = arith.constant 1 : i32
    %0 = arith.addi %arg0, %c1_i32 : i32
    %c8_i32 = arith.constant 8 : i32
    %1 = arith.muli %0, %c8_i32 : i32
    %c0_i32 = arith.constant 0 : i32
    %c0_i32_0 = arith.constant 0 : i32
    return %1, %c0_i32 : i32, i32
  }
  func.func @transform_2(%arg0: i32) -> (i32, i32, i32) {
    %c0_i32 = arith.constant 0 : i32
    %c0_i32_0 = arith.constant 0 : i32
    %c0_i32_1 = arith.constant 0 : i32
    %c0_i32_2 = arith.constant 0 : i32
    return %c0_i32, %c0_i32_0, %c0_i32_1 : i32, i32, i32
  }
  func.func @transform_3(%arg0: i32) -> (i32, i32) {
    %c0_i32 = arith.constant 0 : i32
    %c0_i32_0 = arith.constant 0 : i32
    %c0_i32_1 = arith.constant 0 : i32
    return %c0_i32, %c0_i32_0 : i32, i32
  }
  func.func @transform_4(%arg0: i32) -> (i32, i32) {
    %c0_i32 = arith.constant 0 : i32
    %c0_i32_0 = arith.constant 0 : i32
    return %arg0, %c0_i32 : i32, i32
  }
}

</mosaic_0001>

<llo_original>
// kernel: tpu_custom_call.1
$region0: #{tpu_custom_call.1}
  #allocation0 [shape = 'u32[]', space=smem, size = 0x4, offset = 0x4, fixed_abs, tag = 'smem constant byte address 0x4 - core index']
  #allocation1 [shape = 'u32[144,128]{1,0:T(1,128)}', space=vmem, size = 0x12000, scoped, tag = 'internal scratch']
  %s0 = inlined_call_operand.vmem [shape: bf16[144,32], index: 0, kind: input, shape index: {}]
  %s1 = inlined_call_operand.vmem [shape: bf16[144,32], index: 1, kind: input, shape index: {}]
  %s2 = inlined_call_operand.vmem [shape: bf16[4,32,16], index: 2, kind: input, shape index: {}]
  %s3 = inlined_call_operand.vmem [shape: f32[1,16], index: 3, kind: input, shape index: {}]
  %s4 = inlined_call_operand.vmem [shape: bf16[128,16], index: 4, kind: output, shape index: {}]
  %s5 = sld [smem:[#allocation0]]
  $region26: #{tpu_custom_call.1} parent=0
    _
  %s7 = ssub.s32 1, %s5
  %s8 = scalar_select 0, %s7, %s5
  // Predicated region
  $region2: #{tpu_custom_call.1} parent=0 // pred_check
    _
  $region3: #{tpu_custom_call.1} parent=0 // pred_check_branch
    %10 = sbr.rel (0) target = $region5
  $region4: #{tpu_custom_call.1} parent=0 // pred_region
    _
  $region5: #{tpu_custom_call.1} parent=0 // pred_fallthru
    _
  // Predicated region
  $region6: #{tpu_custom_call.1} parent=0 // pred_check
    _
  $region7: #{tpu_custom_call.1} parent=0 // pred_check_branch
    %12 = sbr.rel (0) target = $region9
  $region8: #{tpu_custom_call.1} parent=0 // pred_region
    %s13 = sadd.s32 0, 1
    %s14 = smul.u32 %s13, 8
    %s15 = smul.u32 2, %s14
    %p16 = scmp.lt.s32.totalorder %s15, 17
    %s17 = scalar_select %p16, %s15, 17
    %s18 = smul.addr %s17, 4
    %s19 = scalar_lea.vmem %s1, %s18
    %s20 = sadd.s32 0, 1
    %s21 = smul.u32 %s20, 8
    %s22 = smul.u32 2, %s21
  $region9: #{tpu_custom_call.1} parent=0 // pred_fallthru
    _
  // Predicated region
  $region10: #{tpu_custom_call.1} parent=0 // pred_check
    _
  $region11: #{tpu_custom_call.1} parent=0 // pred_check_branch
    %24 = sbr.rel (0) target = $region13
  $region12: #{tpu_custom_call.1} parent=0 // pred_region
    _
  $region13: #{tpu_custom_call.1} parent=0 // pred_fallthru
    _
  // Predicated region
  $region14: #{tpu_custom_call.1} parent=0 // pred_check
    _
  $region15: #{tpu_custom_call.1} parent=0 // pred_check_branch
    %26 = sbr.rel (0) target = $region17
  $region16: #{tpu_custom_call.1} parent=0 // pred_region
    _
  $region17: #{tpu_custom_call.1} parent=0 // pred_fallthru
    _
  %s27 = sadd.s32 0, 1
  %s28 = smul.u32 %s27, 8
  %s29 = smul.u32 2, %s28
  %p30 = scmp.lt.s32.totalorder %s29, 17
  %s31 = scalar_select %p30, %s29, 17
  %s32 = smul.addr %s31, 4
  %s33 = scalar_lea.vmem %s1, %s32
  %s34 = sadd.s32 0, 1
  %s35 = smul.u32 %s34, 8
  %s36 = smul.u32 2, %s35
  %p37 = scmp.lt.s32.totalorder %s36, 17
  %s38 = scalar_select %p37, %s36, 17
  %s39 = smul.addr %s38, 4
  %s40 = scalar_lea.vmem %s1, %s39
  %s41 = sadd.s32 0, 1
  %s42 = smul.u32 %s41, 8
  %s43 = smul.u32 2, %s42
  %v45 = vld [vmem:[%s0] sm:$0xf]
  %v46 = vld [vmem:[%s0 + $0x4] sm:$0xf]
  %v47 = vld [vmem:[%s0 + $0x8] sm:$0xf]
  %v48 = vld [vmem:[%s0 + $0xc] sm:$0xf]
  %v49 = vld [vmem:[%s0 + $0x10] sm:$0xf]
  %v50 = vld [vmem:[%s0 + $0x14] sm:$0xf]
  %v51 = vld [vmem:[%s0 + $0x18] sm:$0xf]
  %v52 = vld [vmem:[%s0 + $0x1c] sm:$0xf]
  %v53 = vld [vmem:[%s0 + $0x20] sm:$0xf]
  %v54 = vld [vmem:[%s0 + $0x24] sm:$0xf]
  %v55 = vld [vmem:[%s0 + $0x28] sm:$0xf]
  %v56 = vld [vmem:[%s0 + $0x2c] sm:$0xf]
  %v57 = vld [vmem:[%s0 + $0x30] sm:$0xf]
  %v58 = vld [vmem:[%s0 + $0x34] sm:$0xf]
  %v59 = vld [vmem:[%s0 + $0x38] sm:$0xf]
  %v60 = vld [vmem:[%s0 + $0x3c] sm:$0xf]
  %v61 = vld [vmem:[%s40] sm:$0xf]
  %v62 = vld [vmem:[%s40 + $0x4] sm:$0xf]
  %v79 = vunpack.c.l.b16 %v45
  %v80 = vunpack.c.l.b16 %v46
  %v81 = vunpack.c.l.b16 %v47
  %v82 = vunpack.c.l.b16 %v48
  %v83 = vunpack.c.l.b16 %v49
  %v84 = vunpack.c.l.b16 %v50
  %v85 = vunpack.c.l.b16 %v51
  %v86 = vunpack.c.l.b16 %v52
  %v87 = vunpack.c.l.b16 %v53
  %v88 = vunpack.c.l.b16 %v54
  %v89 = vunpack.c.l.b16 %v55
  %v90 = vunpack.c.l.b16 %v56
  %v91 = vunpack.c.l.b16 %v57
  %v92 = vunpack.c.l.b16 %v58
  %v93 = vunpack.c.l.b16 %v59
  %v94 = vunpack.c.l.b16 %v60
  %v95 = vpack.c.b16 %v80, %v79
  %v96 = vpack.c.b16 %v82, %v81
  %v97 = vpack.c.b16 %v84, %v83
  %v98 = vpack.c.b16 %v86, %v85
  %v99 = vpack.c.b16 %v88, %v87
  %v100 = vpack.c.b16 %v90, %v89
  %v101 = vpack.c.b16 %v92, %v91
  %v102 = vpack.c.b16 %v94, %v93
  %v105 = vunpack.c.l.b16 %v61
  %v106 = vunpack.c.l.b16 %v62
  %v107 = vpack.c.b16 %v106, %v105
  %v108 = vld [vmem:[%s3] sm:$0x1]
  %v109 = vld [vmem:[%s2] sm:$0xf]
  %v110 = vld [vmem:[%s2 + $0x4] sm:$0xf]
  %v111 = vld [vmem:[%s2 + $0x8] sm:$0xf]
  %v112 = vld [vmem:[%s2 + $0xc] sm:$0xf]
  %s113 = scalar_lea.vmem %s2, 16
  %v114 = vld [vmem:[%s113] sm:$0xf]
  %v115 = vld [vmem:[%s113 + $0x4] sm:$0xf]
  %v116 = vld [vmem:[%s113 + $0x8] sm:$0xf]
  %v117 = vld [vmem:[%s113 + $0xc] sm:$0xf]
  %vm118 = vsmask.f32 7424
  %v120 = vshrl.u32 %v95, 16
  %v122 = vshll.u32 %v95, 16
  %v124 = vrot.slane %v122, 1
  %v125 = vor.u32 %v120, %v124
  %v127 = vshll.u32 %v96, 16
  %v129 = vrot.slane %v127, 1
  %v130 = vsel %vm118, %v125, %v129
  %v131 = vshrl.u32 %v96, 16
  %v133 = vor.u32 %v131, %v129
  %v135 = vshll.u32 %v97, 16
  %v137 = vrot.slane %v135, 1
  %v138 = vsel %vm118, %v133, %v137
  %v139 = vshrl.u32 %v97, 16
  %v141 = vor.u32 %v139, %v137
  %v143 = vshll.u32 %v98, 16
  %v145 = vrot.slane %v143, 1
  %v146 = vsel %vm118, %v141, %v145
  %v147 = vshrl.u32 %v98, 16
  %v149 = vor.u32 %v147, %v145
  %v151 = vshll.u32 %v99, 16
  %v153 = vrot.slane %v151, 1
  %v154 = vsel %vm118, %v149, %v153
  %v155 = vshrl.u32 %v99, 16
  %v157 = vor.u32 %v155, %v153
  %v159 = vshll.u32 %v100, 16
  %v161 = vrot.slane %v159, 1
  %v162 = vsel %vm118, %v157, %v161
  %v163 = vshrl.u32 %v100, 16
  %v165 = vor.u32 %v163, %v161
  %v167 = vshll.u32 %v101, 16
  %v169 = vrot.slane %v167, 1
  %v170 = vsel %vm118, %v165, %v169
  %v171 = vshrl.u32 %v101, 16
  %v173 = vor.u32 %v171, %v169
  %v175 = vshll.u32 %v102, 16
  %v177 = vrot.slane %v175, 1
  %v178 = vsel %vm118, %v173, %v177
  %v179 = vshrl.u32 %v102, 16
  %v181 = vor.u32 %v179, %v177
  %v183 = vshll.u32 %v107, 16
  %v185 = vrot.slane %v183, 1
  %v186 = vsel %vm118, %v181, %v185
  %v191 = vunpack.c.l.b16 %v114
  %v192 = vunpack.c.l.b16 %v115
  %v193 = vunpack.c.l.b16 %v116
  %v194 = vunpack.c.l.b16 %v117
  %v195 = vpack.c.b16 %v192, %v191
  %v196 = vpack.c.b16 %v194, %v193
  %vm199 = vcmask 261120
  %v201 = vsel %vm199, %v130, 0
  %v204 = vsel %vm199, %v138, 0
  %v207 = vsel %vm199, %v146, 0
  %v210 = vsel %vm199, %v154, 0
  %v213 = vsel %vm199, %v162, 0
  %v216 = vsel %vm199, %v170, 0
  %v219 = vsel %vm199, %v178, 0
  %v222 = vsel %vm199, %v186, 0
  %224 = vmatprep.subr.bf16.mxu0 0
  %225 = vmatpush1.bf16.msra.mxu0 %v195
  %226 = vmatprep.subr.bf16.mxu0 0
  %227 = vmatpush1.bf16.msra.mxu0 %v196
  %228 = vmatprep.subr.bf16.mxu0 0
  %229 = vmatpush1.bf16.msra.mxu0 0
  %230 = vmatprep.subr.bf16.mxu0 0
  %231 = vmatpush1.bf16.msra.mxu0 0
  %232 = vmatprep.subr.bf16.mxu0 0
  %233 = vmatpush1.bf16.msra.mxu0 0
  %234 = vmatprep.subr.bf16.mxu0 0
  %235 = vmatpush1.bf16.msra.mxu0 0
  %236 = vmatprep.subr.bf16.mxu0 0
  %237 = vmatpush1.bf16.msra.mxu0 0
  %238 = vmatprep.subr.bf16.mxu0 0
  %239 = vmatpush1.bf16.msra.mxu0 0
  %240 = vmatprep.subr.bf16.mxu0 0
  %241 = vmatpush1.bf16.msra.mxu0 0
  %242 = vmatprep.subr.bf16.mxu0 0
  %243 = vmatpush1.bf16.msra.mxu0 0
  %244 = vmatprep.subr.bf16.mxu0 0
  %245 = vmatpush1.bf16.msra.mxu0 0
  %246 = vmatprep.subr.bf16.mxu0 0
  %247 = vmatpush1.bf16.msra.mxu0 0
  %248 = vmatprep.subr.bf16.mxu0 0
  %249 = vmatpush1.bf16.msra.mxu0 0
  %250 = vmatprep.subr.bf16.mxu0 0
  %251 = vmatpush1.bf16.msra.mxu0 0
  %252 = vmatprep.subr.bf16.mxu0 0
  %253 = vmatpush1.bf16.msra.mxu0 0
  %254 = vmatprep.subr.bf16.mxu0 0
  %255 = vmatpush1.bf16.msra.mxu0 0
  %256 = vmatprep.mubr.bf16.mxu0 0
  %257 = vmatmul.mubr.bf16.gmra.mrb[0].mxu0 %v201
  %v258 = vpop.f32.mrb[0].mxu0
  %v259 = vadd.f32 0.0, %v258
  %v260 = vpop.f32.mrb[0].mxu0
  %v261 = vpop.f32.mrb[0].mxu0
  %v262 = vadd.f32 0.0, %v261
  %v263 = vpop.f32.mrb[0].mxu0
  %264 = vmatprep.mubr.bf16.mxu0 0
  %265 = vmatmul.mubr.bf16.gmra.mrb[0].mxu0 %v204
  %v266 = vpop.f32.mrb[0].mxu0
  %v267 = vadd.f32 0.0, %v266
  %v268 = vpop.f32.mrb[0].mxu0
  %v269 = vpop.f32.mrb[0].mxu0
  %v270 = vadd.f32 0.0, %v269
  %v271 = vpop.f32.mrb[0].mxu0
  %272 = vmatprep.mubr.bf16.mxu0 0
  %273 = vmatmul.mubr.bf16.gmra.mrb[0].mxu0 %v207
  %v274 = vpop.f32.mrb[0].mxu0
  %v275 = vadd.f32 0.0, %v274
  %v276 = vpop.f32.mrb[0].mxu0
  %v277 = vpop.f32.mrb[0].mxu0
  %v278 = vadd.f32 0.0, %v277
  %v279 = vpop.f32.mrb[0].mxu0
  %280 = vmatprep.mubr.bf16.mxu0 0
  %281 = vmatmul.mubr.bf16.gmra.mrb[0].mxu0 %v210
  %v282 = vpop.f32.mrb[0].mxu0
  %v283 = vadd.f32 0.0, %v282
  %v284 = vpop.f32.mrb[0].mxu0
  %v285 = vpop.f32.mrb[0].mxu0
  %v286 = vadd.f32 0.0, %v285
  %v287 = vpop.f32.mrb[0].mxu0
  %288 = vmatprep.mubr.bf16.mxu0 0
  %289 = vmatmul.mubr.bf16.gmra.mrb[0].mxu0 %v213
  %v290 = vpop.f32.mrb[0].mxu0
  %v291 = vadd.f32 0.0, %v290
  %v292 = vpop.f32.mrb[0].mxu0
  %v293 = vpop.f32.mrb[0].mxu0
  %v294 = vadd.f32 0.0, %v293
  %v295 = vpop.f32.mrb[0].mxu0
  %296 = vmatprep.mubr.bf16.mxu0 0
  %297 = vmatmul.mubr.bf16.gmra.mrb[0].mxu0 %v216
  %v298 = vpop.f32.mrb[0].mxu0
  %v299 = vadd.f32 0.0, %v298
  %v300 = vpop.f32.mrb[0].mxu0
  %v301 = vpop.f32.mrb[0].mxu0
  %v302 = vadd.f32 0.0, %v301
  %v303 = vpop.f32.mrb[0].mxu0
  %304 = vmatprep.mubr.bf16.mxu0 0
  %305 = vmatmul.mubr.bf16.gmra.mrb[0].mxu0 %v219
  %v306 = vpop.f32.mrb[0].mxu0
  %v307 = vadd.f32 0.0, %v306
  %v308 = vpop.f32.mrb[0].mxu0
  %v309 = vpop.f32.mrb[0].mxu0
  %v310 = vadd.f32 0.0, %v309
  %v311 = vpop.f32.mrb[0].mxu0
  %312 = vmatprep.mubr.bf16.mxu0 0
  %313 = vmatmul.mubr.bf16.gmra.mrb[0].mxu0 %v222
  %v314 = vpop.f32.mrb[0].mxu0
  %v315 = vadd.f32 0.0, %v314
  %v316 = vpop.f32.mrb[0].mxu0
  %v317 = vpop.f32.mrb[0].mxu0
  %v318 = vadd.f32 0.0, %v317
  %v319 = vpop.f32.mrb[0].mxu0
  %320 = vdwg.mxu0
  %v325 = vunpack.c.l.b16 %v109
  %v326 = vunpack.c.l.b16 %v110
  %v327 = vunpack.c.l.b16 %v111
  %v328 = vunpack.c.l.b16 %v112
  %v329 = vpack.c.b16 %v326, %v325
  %v330 = vpack.c.b16 %v328, %v327
  %v333 = vsel %vm199, %v95, 0
  %v335 = vsel %vm199, %v96, 0
  %v337 = vsel %vm199, %v97, 0
  %v339 = vsel %vm199, %v98, 0
  %v341 = vsel %vm199, %v99, 0
  %v343 = vsel %vm199, %v100, 0
  %v345 = vsel %vm199, %v101, 0
  %v347 = vsel %vm199, %v102, 0
  %349 = vmatprep.subr.bf16.mxu0 0
  %350 = vmatpush1.bf16.msra.mxu0 %v329
  %351 = vmatprep.subr.bf16.mxu0 0
  %352 = vmatpush1.bf16.msra.mxu0 %v330
  %353 = vmatprep.subr.bf16.mxu0 0
  %354 = vmatpush1.bf16.msra.mxu0 0
  %355 = vmatprep.subr.bf16.mxu0 0
  %356 = vmatpush1.bf16.msra.mxu0 0
  %357 = vmatprep.subr.bf16.mxu0 0
  %358 = vmatpush1.bf16.msra.mxu0 0
  %359 = vmatprep.subr.bf16.mxu0 0
  %360 = vmatpush1.bf16.msra.mxu0 0
  %361 = vmatprep.subr.bf16.mxu0 0
  %362 = vmatpush1.bf16.msra.mxu0 0
  %363 = vmatprep.subr.bf16.mxu0 0
  %364 = vmatpush1.bf16.msra.mxu0 0
  %365 = vmatprep.subr.bf16.mxu0 0
  %366 = vmatpush1.bf16.msra.mxu0 0
  %367 = vmatprep.subr.bf16.mxu0 0
  %368 = vmatpush1.bf16.msra.mxu0 0
  %369 = vmatprep.subr.bf16.mxu0 0
  %370 = vmatpush1.bf16.msra.mxu0 0
  %371 = vmatprep.subr.bf16.mxu0 0
  %372 = vmatpush1.bf16.msra.mxu0 0
  %373 = vmatprep.subr.bf16.mxu0 0
  %374 = vmatpush1.bf16.msra.mxu0 0
  %375 = vmatprep.subr.bf16.mxu0 0
  %376 = vmatpush1.bf16.msra.mxu0 0
  %377 = vmatprep.subr.bf16.mxu0 0
  %378 = vmatpush1.bf16.msra.mxu0 0
  %379 = vmatprep.subr.bf16.mxu0 0
  %380 = vmatpush1.bf16.msra.mxu0 0
  %381 = vmatprep.mubr.bf16.mxu0 0
  %382 = vmatmul.mubr.bf16.gmra.mrb[0].mxu0 %v333
  %v383 = vpop.f32.mrb[0].mxu0
  %v384 = vadd.f32 %v259, %v383
  %v385 = vpop.f32.mrb[0].mxu0
  %v386 = vpop.f32.mrb[0].mxu0
  %v387 = vadd.f32 %v262, %v386
  %v388 = vpop.f32.mrb[0].mxu0
  %389 = vmatprep.mubr.bf16.mxu0 0
  %390 = vmatmul.mubr.bf16.gmra.mrb[0].mxu0 %v335
  %v391 = vpop.f32.mrb[0].mxu0
  %v392 = vadd.f32 %v267, %v391
  %v393 = vpop.f32.mrb[0].mxu0
  %v394 = vpop.f32.mrb[0].mxu0
  %v395 = vadd.f32 %v270, %v394
  %v396 = vpop.f32.mrb[0].mxu0
  %397 = vmatprep.mubr.bf16.mxu0 0
  %398 = vmatmul.mubr.bf16.gmra.mrb[0].mxu0 %v337
  %v399 = vpop.f32.mrb[0].mxu0
  %v400 = vadd.f32 %v275, %v399
  %v401 = vpop.f32.mrb[0].mxu0
  %v402 = vpop.f32.mrb[0].mxu0
  %v403 = vadd.f32 %v278, %v402
  %v404 = vpop.f32.mrb[0].mxu0
  %405 = vmatprep.mubr.bf16.mxu0 0
  %406 = vmatmul.mubr.bf16.gmra.mrb[0].mxu0 %v339
  %v407 = vpop.f32.mrb[0].mxu0
  %v408 = vadd.f32 %v283, %v407
  %v409 = vpop.f32.mrb[0].mxu0
  %v410 = vpop.f32.mrb[0].mxu0
  %v411 = vadd.f32 %v286, %v410
  %v412 = vpop.f32.mrb[0].mxu0
  %413 = vmatprep.mubr.bf16.mxu0 0
  %414 = vmatmul.mubr.bf16.gmra.mrb[0].mxu0 %v341
  %v415 = vpop.f32.mrb[0].mxu0
  %v416 = vadd.f32 %v291, %v415
  %v417 = vpop.f32.mrb[0].mxu0
  %v418 = vpop.f32.mrb[0].mxu0
  %v419 = vadd.f32 %v294, %v418
  %v420 = vpop.f32.mrb[0].mxu0
  %421 = vmatprep.mubr.bf16.mxu0 0
  %422 = vmatmul.mubr.bf16.gmra.mrb[0].mxu0 %v343
  %v423 = vpop.f32.mrb[0].mxu0
  %v424 = vadd.f32 %v299, %v423
  %v425 = vpop.f32.mrb[0].mxu0
  %v426 = vpop.f32.mrb[0].mxu0
  %v427 = vadd.f32 %v302, %v426
  %v428 = vpop.f32.mrb[0].mxu0
  %429 = vmatprep.mubr.bf16.mxu0 0
  %430 = vmatmul.mubr.bf16.gmra.mrb[0].mxu0 %v345
  %v431 = vpop.f32.mrb[0].mxu0
  %v432 = vadd.f32 %v307, %v431
  %v433 = vpop.f32.mrb[0].mxu0
  %v434 = vpop.f32.mrb[0].mxu0
  %v435 = vadd.f32 %v310, %v434
  %v436 = vpop.f32.mrb[0].mxu0
  %437 = vmatprep.mubr.bf16.mxu0 0
  %438 = vmatmul.mubr.bf16.gmra.mrb[0].mxu0 %v347
  %v439 = vpop.f32.mrb[0].mxu0
  %v440 = vadd.f32 %v315, %v439
  %v441 = vpop.f32.mrb[0].mxu0
  %v442 = vpop.f32.mrb[0].mxu0
  %v443 = vadd.f32 %v318, %v442
  %v444 = vpop.f32.mrb[0].mxu0
  %445 = vdwg.mxu0
  %s446 = scalar_lea.vmem %s2, 32
  %v447 = vld [vmem:[%s446] sm:$0xf]
  %v448 = vld [vmem:[%s446 + $0x4] sm:$0xf]
  %v449 = vld [vmem:[%s446 + $0x8] sm:$0xf]
  %v450 = vld [vmem:[%s446 + $0xc] sm:$0xf]
  %vm451 = vsmask.f32 3328
  %v452 = vrot.slane %v120, 4
  %v453 = vrot.slane %v122, 5
  %v454 = vor.u32 %v452, %v453
  %v455 = vrot.slane %v131, 4
  %v456 = vrot.slane %v127, 5
  %v457 = vor.u32 %v455, %v456
  %v458 = vsel %vm451, %v454, %v457
  %v459 = vrot.slane %v139, 4
  %v460 = vrot.slane %v135, 5
  %v461 = vor.u32 %v459, %v460
  %v462 = vsel %vm451, %v457, %v461
  %v463 = vrot.slane %v147, 4
  %v464 = vrot.slane %v143, 5
  %v465 = vor.u32 %v463, %v464
  %v466 = vsel %vm451, %v461, %v465
  %v467 = vrot.slane %v155, 4
  %v468 = vrot.slane %v151, 5
  %v469 = vor.u32 %v467, %v468
  %v470 = vsel %vm451, %v465, %v469
  %v471 = vrot.slane %v163, 4
  %v472 = vrot.slane %v159, 5
  %v473 = vor.u32 %v471, %v472
  %v474 = vsel %vm451, %v469, %v473
  %v475 = vrot.slane %v171, 4
  %v476 = vrot.slane %v167, 5
  %v477 = vor.u32 %v475, %v476
  %v478 = vsel %vm451, %v473, %v477
  %v479 = vrot.slane %v179, 4
  %v480 = vrot.slane %v175, 5
  %v481 = vor.u32 %v479, %v480
  %v482 = vsel %vm451, %v477, %v481
  %v483 = vshrl.u32 %v107, 16
  %v485 = vrot.slane %v483, 4
  %v486 = vrot.slane %v183, 5
  %v487 = vor.u32 %v485, %v486
  %v488 = vsel %vm451, %v481, %v487
  %v493 = vunpack.c.l.b16 %v447
  %v494 = vunpack.c.l.b16 %v448
  %v495 = vunpack.c.l.b16 %v449
  %v496 = vunpack.c.l.b16 %v450
  %v497 = vpack.c.b16 %v494, %v493
  %v498 = vpack.c.b16 %v496, %v495
  %v502 = vsel %vm199, %v458, 0
  %v505 = vsel %vm199, %v462, 0
  %v508 = vsel %vm199, %v466, 0
  %v511 = vsel %vm199, %v470, 0
  %v514 = vsel %vm199, %v474, 0
  %v517 = vsel %vm199, %v478, 0
  %v520 = vsel %vm199, %v482, 0
  %v523 = vsel %vm199, %v488, 0
  %525 = vmatprep.subr.bf16.mxu0 0
  %526 = vmatpush1.bf16.msra.mxu0 %v497
  %527 = vmatprep.subr.bf16.mxu0 0
  %528 = vmatpush1.bf16.msra.mxu0 %v498
  %529 = vmatprep.subr.bf16.mxu0 0
  %530 = vmatpush1.bf16.msra.mxu0 0
  %531 = vmatprep.subr.bf16.mxu0 0
  %532 = vmatpush1.bf16.msra.mxu0 0
  %533 = vmatprep.subr.bf16.mxu0 0
  %534 = vmatpush1.bf16.msra.mxu0 0
  %535 = vmatprep.subr.bf16.mxu0 0
  %536 = vmatpush1.bf16.msra.mxu0 0
  %537 = vmatprep.subr.bf16.mxu0 0
  %538 = vmatpush1.bf16.msra.mxu0 0
  %539 = vmatprep.subr.bf16.mxu0 0
  %540 = vmatpush1.bf16.msra.mxu0 0
  %541 = vmatprep.subr.bf16.mxu0 0
  %542 = vmatpush1.bf16.msra.mxu0 0
  %543 = vmatprep.subr.bf16.mxu0 0
  %544 = vmatpush1.bf16.msra.mxu0 0
  %545 = vmatprep.subr.bf16.mxu0 0
  %546 = vmatpush1.bf16.msra.mxu0 0
  %547 = vmatprep.subr.bf16.mxu0 0
  %548 = vmatpush1.bf16.msra.mxu0 0
  %549 = vmatprep.subr.bf16.mxu0 0
  %550 = vmatpush1.bf16.msra.mxu0 0
  %551 = vmatprep.subr.bf16.mxu0 0
  %552 = vmatpush1.bf16.msra.mxu0 0
  %553 = vmatprep.subr.bf16.mxu0 0
  %554 = vmatpush1.bf16.msra.mxu0 0
  %555 = vmatprep.subr.bf16.mxu0 0
  %556 = vmatpush1.bf16.msra.mxu0 0
  %557 = vmatprep.mubr.bf16.mxu0 0
  %558 = vmatmul.mubr.bf16.gmra.mrb[0].mxu0 %v502
  %v559 = vpop.f32.mrb[0].mxu0
  %v560 = vadd.f32 0.0, %v559
  %v561 = vpop.f32.mrb[0].mxu0
  %v562 = vpop.f32.mrb[0].mxu0
  %v563 = vadd.f32 0.0, %v562
  %v564 = vpop.f32.mrb[0].mxu0
  %565 = vmatprep.mubr.bf16.mxu0 0
  %566 = vmatmul.mubr.bf16.gmra.mrb[0].mxu0 %v505
  %v567 = vpop.f32.mrb[0].mxu0
  %v568 = vadd.f32 0.0, %v567
  %v569 = vpop.f32.mrb[0].mxu0
  %v570 = vpop.f32.mrb[0].mxu0
  %v571 = vadd.f32 0.0, %v570
  %v572 = vpop.f32.mrb[0].mxu0
  %573 = vmatprep.mubr.bf16.mxu0 0
  %574 = vmatmul.mubr.bf16.gmra.mrb[0].mxu0 %v508
  %v575 = vpop.f32.mrb[0].mxu0
  %v576 = vadd.f32 0.0, %v575
  %v577 = vpop.f32.mrb[0].mxu0
  %v578 = vpop.f32.mrb[0].mxu0
  %v579 = vadd.f32 0.0, %v578
  %v580 = vpop.f32.mrb[0].mxu0
  %581 = vmatprep.mubr.bf16.mxu0 0
  %582 = vmatmul.mubr.bf16.gmra.mrb[0].mxu0 %v511
  %v583 = vpop.f32.mrb[0].mxu0
  %v584 = vadd.f32 0.0, %v583
  %v585 = vpop.f32.mrb[0].mxu0
  %v586 = vpop.f32.mrb[0].mxu0
  %v587 = vadd.f32 0.0, %v586
  %v588 = vpop.f32.mrb[0].mxu0
  %589 = vmatprep.mubr.bf16.mxu0 0
  %590 = vmatmul.mubr.bf16.gmra.mrb[0].mxu0 %v514
  %v591 = vpop.f32.mrb[0].mxu0
  %v592 = vadd.f32 0.0, %v591
  %v593 = vpop.f32.mrb[0].mxu0
  %v594 = vpop.f32.mrb[0].mxu0
  %v595 = vadd.f32 0.0, %v594
  %v596 = vpop.f32.mrb[0].mxu0
  %597 = vmatprep.mubr.bf16.mxu0 0
  %598 = vmatmul.mubr.bf16.gmra.mrb[0].mxu0 %v517
  %v599 = vpop.f32.mrb[0].mxu0
  %v600 = vadd.f32 0.0, %v599
  %v601 = vpop.f32.mrb[0].mxu0
  %v602 = vpop.f32.mrb[0].mxu0
  %v603 = vadd.f32 0.0, %v602
  %v604 = vpop.f32.mrb[0].mxu0
  %605 = vmatprep.mubr.bf16.mxu0 0
  %606 = vmatmul.mubr.bf16.gmra.mrb[0].mxu0 %v520
  %v607 = vpop.f32.mrb[0].mxu0
  %v608 = vadd.f32 0.0, %v607
  %v609 = vpop.f32.mrb[0].mxu0
  %v610 = vpop.f32.mrb[0].mxu0
  %v611 = vadd.f32 0.0, %v610
  %v612 = vpop.f32.mrb[0].mxu0
  %613 = vmatprep.mubr.bf16.mxu0 0
  %614 = vmatmul.mubr.bf16.gmra.mrb[0].mxu0 %v523
  %v615 = vpop.f32.mrb[0].mxu0
  %v616 = vadd.f32 0.0, %v615
  %v617 = vpop.f32.mrb[0].mxu0
  %v618 = vpop.f32.mrb[0].mxu0
  %v619 = vadd.f32 0.0, %v618
  %v620 = vpop.f32.mrb[0].mxu0
  %621 = vdwg.mxu0
  %v622 = vadd.f32 %v384, %v560
  %v623 = vadd.f32 %v387, %v563
  %v624 = vadd.f32 %v392, %v568
  %v625 = vadd.f32 %v395, %v571
  %v626 = vadd.f32 %v400, %v576
  %v627 = vadd.f32 %v403, %v579
  %v628 = vadd.f32 %v408, %v584
  %v629 = vadd.f32 %v411, %v587
  %v630 = vadd.f32 %v416, %v592
  %v631 = vadd.f32 %v419, %v595
  %v632 = vadd.f32 %v424, %v600
  %v633 = vadd.f32 %v427, %v603
  %v634 = vadd.f32 %v432, %v608
  %v635 = vadd.f32 %v435, %v611
  %v636 = vadd.f32 %v440, %v616
  %v637 = vadd.f32 %v443, %v619
  %s638 = scalar_lea.vmem %s2, 48
  %v639 = vld [vmem:[%s638] sm:$0xf]
  %v640 = vld [vmem:[%s638 + $0x4] sm:$0xf]
  %v641 = vld [vmem:[%s638 + $0x8] sm:$0xf]
  %v642 = vld [vmem:[%s638 + $0xc] sm:$0xf]
  %vm643 = vcmask 1042432
  %v644 = vrot.slane %v95, 5
  %v645 = vrot.slane %v96, 5
  %v646 = vsel %vm643, %v644, %v645
  %v647 = vrot.slane %v97, 5
  %v648 = vsel %vm643, %v645, %v647
  %v649 = vrot.slane %v98, 5
  %v650 = vsel %vm643, %v647, %v649
  %v651 = vrot.slane %v99, 5
  %v652 = vsel %vm643, %v649, %v651
  %v653 = vrot.slane %v100, 5
  %v654 = vsel %vm643, %v651, %v653
  %v655 = vrot.slane %v101, 5
  %v656 = vsel %vm643, %v653, %v655
  %v657 = vrot.slane %v102, 5
  %v658 = vsel %vm643, %v655, %v657
  %v659 = vrot.slane %v107, 5
  %v660 = vsel %vm643, %v657, %v659
  %v665 = vunpack.c.l.b16 %v639
  %v666 = vunpack.c.l.b16 %v640
  %v667 = vunpack.c.l.b16 %v641
  %v668 = vunpack.c.l.b16 %v642
  %v669 = vpack.c.b16 %v666, %v665
  %v670 = vpack.c.b16 %v668, %v667
  %v674 = vsel %vm199, %v646, 0
  %v677 = vsel %vm199, %v648, 0
  %v680 = vsel %vm199, %v650, 0
  %v683 = vsel %vm199, %v652, 0
  %v686 = vsel %vm199, %v654, 0
  %v689 = vsel %vm199, %v656, 0
  %v692 = vsel %vm199, %v658, 0
  %v695 = vsel %vm199, %v660, 0
  %697 = vmatprep.subr.bf16.mxu0 0
  %698 = vmatpush1.bf16.msra.mxu0 %v669
  %699 = vmatprep.subr.bf16.mxu0 0
  %700 = vmatpush1.bf16.msra.mxu0 %v670
  %701 = vmatprep.subr.bf16.mxu0 0
  %702 = vmatpush1.bf16.msra.mxu0 0
  %703 = vmatprep.subr.bf16.mxu0 0
  %704 = vmatpush1.bf16.msra.mxu0 0
  %705 = vmatprep.subr.bf16.mxu0 0
  %706 = vmatpush1.bf16.msra.mxu0 0
  %707 = vmatprep.subr.bf16.mxu0 0
  %708 = vmatpush1.bf16.msra.mxu0 0
  %709 = vmatprep.subr.bf16.mxu0 0
  %710 = vmatpush1.bf16.msra.mxu0 0
  %711 = vmatprep.subr.bf16.mxu0 0
  %712 = vmatpush1.bf16.msra.mxu0 0
  %713 = vmatprep.subr.bf16.mxu0 0
  %714 = vmatpush1.bf16.msra.mxu0 0
  %715 = vmatprep.subr.bf16.mxu0 0
  %716 = vmatpush1.bf16.msra.mxu0 0
  %717 = vmatprep.subr.bf16.mxu0 0
  %718 = vmatpush1.bf16.msra.mxu0 0
  %719 = vmatprep.subr.bf16.mxu0 0
  %720 = vmatpush1.bf16.msra.mxu0 0
  %721 = vmatprep.subr.bf16.mxu0 0
  %722 = vmatpush1.bf16.msra.mxu0 0
  %723 = vmatprep.subr.bf16.mxu0 0
  %724 = vmatpush1.bf16.msra.mxu0 0
  %725 = vmatprep.subr.bf16.mxu0 0
  %726 = vmatpush1.bf16.msra.mxu0 0
  %727 = vmatprep.subr.bf16.mxu0 0
  %728 = vmatpush1.bf16.msra.mxu0 0
  %729 = vmatprep.mubr.bf16.mxu0 0
  %730 = vmatmul.mubr.bf16.gmra.mrb[0].mxu0 %v674
  %v731 = vpop.f32.mrb[0].mxu0
  %v732 = vadd.f32 0.0, %v731
  %v733 = vpop.f32.mrb[0].mxu0
  %v734 = vpop.f32.mrb[0].mxu0
  %v735 = vadd.f32 0.0, %v734
  %v736 = vpop.f32.mrb[0].mxu0
  %737 = vmatprep.mubr.bf16.mxu0 0
  %738 = vmatmul.mubr.bf16.gmra.mrb[0].mxu0 %v677
  %v739 = vpop.f32.mrb[0].mxu0
  %v740 = vadd.f32 0.0, %v739
  %v741 = vpop.f32.mrb[0].mxu0
  %v742 = vpop.f32.mrb[0].mxu0
  %v743 = vadd.f32 0.0, %v742
  %v744 = vpop.f32.mrb[0].mxu0
  %745 = vmatprep.mubr.bf16.mxu0 0
  %746 = vmatmul.mubr.bf16.gmra.mrb[0].mxu0 %v680
  %v747 = vpop.f32.mrb[0].mxu0
  %v748 = vadd.f32 0.0, %v747
  %v749 = vpop.f32.mrb[0].mxu0
  %v750 = vpop.f32.mrb[0].mxu0
  %v751 = vadd.f32 0.0, %v750
  %v752 = vpop.f32.mrb[0].mxu0
  %753 = vmatprep.mubr.bf16.mxu0 0
  %754 = vmatmul.mubr.bf16.gmra.mrb[0].mxu0 %v683
  %v755 = vpop.f32.mrb[0].mxu0
  %v756 = vadd.f32 0.0, %v755
  %v757 = vpop.f32.mrb[0].mxu0
  %v758 = vpop.f32.mrb[0].mxu0
  %v759 = vadd.f32 0.0, %v758
  %v760 = vpop.f32.mrb[0].mxu0
  %761 = vmatprep.mubr.bf16.mxu0 0
  %762 = vmatmul.mubr.bf16.gmra.mrb[0].mxu0 %v686
  %v763 = vpop.f32.mrb[0].mxu0
  %v764 = vadd.f32 0.0, %v763
  %v765 = vpop.f32.mrb[0].mxu0
  %v766 = vpop.f32.mrb[0].mxu0
  %v767 = vadd.f32 0.0, %v766
  %v768 = vpop.f32.mrb[0].mxu0
  %769 = vmatprep.mubr.bf16.mxu0 0
  %770 = vmatmul.mubr.bf16.gmra.mrb[0].mxu0 %v689
  %v771 = vpop.f32.mrb[0].mxu0
  %v772 = vadd.f32 0.0, %v771
  %v773 = vpop.f32.mrb[0].mxu0
  %v774 = vpop.f32.mrb[0].mxu0
  %v775 = vadd.f32 0.0, %v774
  %v776 = vpop.f32.mrb[0].mxu0
  %777 = vmatprep.mubr.bf16.mxu0 0
  %778 = vmatmul.mubr.bf16.gmra.mrb[0].mxu0 %v692
  %v779 = vpop.f32.mrb[0].mxu0
  %v780 = vadd.f32 0.0, %v779
  %v781 = vpop.f32.mrb[0].mxu0
  %v782 = vpop.f32.mrb[0].mxu0
  %v783 = vadd.f32 0.0, %v782
  %v784 = vpop.f32.mrb[0].mxu0
  %785 = vmatprep.mubr.bf16.mxu0 0
  %786 = vmatmul.mubr.bf16.gmra.mrb[0].mxu0 %v695
  %v787 = vpop.f32.mrb[0].mxu0
  %v788 = vadd.f32 0.0, %v787
  %v789 = vpop.f32.mrb[0].mxu0
  %v790 = vpop.f32.mrb[0].mxu0
  %v791 = vadd.f32 0.0, %v790
  %v792 = vpop.f32.mrb[0].mxu0
  %793 = vdwg.mxu0
  %v794 = vadd.f32 %v622, %v732
  %v795 = vadd.f32 %v623, %v735
  %v796 = vadd.f32 %v624, %v740
  %v797 = vadd.f32 %v625, %v743
  %v798 = vadd.f32 %v626, %v748
  %v799 = vadd.f32 %v627, %v751
  %v800 = vadd.f32 %v628, %v756
  %v801 = vadd.f32 %v629, %v759
  %v802 = vadd.f32 %v630, %v764
  %v803 = vadd.f32 %v631, %v767
  %v804 = vadd.f32 %v632, %v772
  %v805 = vadd.f32 %v633, %v775
  %v806 = vadd.f32 %v634, %v780
  %v807 = vadd.f32 %v635, %v783
  %v808 = vadd.f32 %v636, %v788
  %v809 = vadd.f32 %v637, %v791
  %v811 = vlaneseq
  %v812 = vshrl.u32 %v811, 7
  %v813 = vsub.s32 0, %v812
  %v814 = vrot.slane %v108, %v813
  %v816 = vadd.f32 %v794, %v814
  %v817 = vadd.f32 %v795, %v814
  %v818 = vadd.f32 %v796, %v814
  %v819 = vadd.f32 %v797, %v814
  %v820 = vadd.f32 %v798, %v814
  %v821 = vadd.f32 %v799, %v814
  %v822 = vadd.f32 %v800, %v814
  %v823 = vadd.f32 %v801, %v814
  %v824 = vadd.f32 %v802, %v814
  %v825 = vadd.f32 %v803, %v814
  %v826 = vadd.f32 %v804, %v814
  %v827 = vadd.f32 %v805, %v814
  %v828 = vadd.f32 %v806, %v814
  %v829 = vadd.f32 %v807, %v814
  %v830 = vadd.f32 %v808, %v814
  %v831 = vadd.f32 %v809, %v814
  %v832 = vpack.c.bf16 %v817, %v816
  %v833 = vpack.c.bf16 %v819, %v818
  %v834 = vpack.c.bf16 %v821, %v820
  %v835 = vpack.c.bf16 %v823, %v822
  %v836 = vpack.c.bf16 %v825, %v824
  %v837 = vpack.c.bf16 %v827, %v826
  %v838 = vpack.c.bf16 %v829, %v828
  %v839 = vpack.c.bf16 %v831, %v830
  %v848 = vunpack.c.l.b16 %v832
  %v849 = vunpack.c.h.b16 %v832
  %v850 = vunpack.c.l.b16 %v833
  %v851 = vunpack.c.h.b16 %v833
  %v852 = vunpack.c.l.b16 %v834
  %v853 = vunpack.c.h.b16 %v834
  %v854 = vunpack.c.l.b16 %v835
  %v855 = vunpack.c.h.b16 %v835
  %v856 = vunpack.c.l.b16 %v836
  %v857 = vunpack.c.h.b16 %v836
  %v858 = vunpack.c.l.b16 %v837
  %v859 = vunpack.c.h.b16 %v837
  %v860 = vunpack.c.l.b16 %v838
  %v861 = vunpack.c.h.b16 %v838
  %v862 = vunpack.c.l.b16 %v839
  %v863 = vunpack.c.h.b16 %v839
  %v864 = vpack.c.b16 %v848, %v848
  %v865 = vpack.c.b16 %v849, %v849
  %v866 = vpack.c.b16 %v850, %v850
  %v867 = vpack.c.b16 %v851, %v851
  %v868 = vpack.c.b16 %v852, %v852
  %v869 = vpack.c.b16 %v853, %v853
  %v870 = vpack.c.b16 %v854, %v854
  %v871 = vpack.c.b16 %v855, %v855
  %v872 = vpack.c.b16 %v856, %v856
  %v873 = vpack.c.b16 %v857, %v857
  %v874 = vpack.c.b16 %v858, %v858
  %v875 = vpack.c.b16 %v859, %v859
  %v876 = vpack.c.b16 %v860, %v860
  %v877 = vpack.c.b16 %v861, %v861
  %v878 = vpack.c.b16 %v862, %v862
  %v879 = vpack.c.b16 %v863, %v863
  %vm896 = vcmask 125952
  %897 = vst.msk [vmem:[%s4] sm:$0xf] %vm896, %v864
  %898 = vst.msk [vmem:[%s4 + $0x4] sm:$0xf] %vm896, %v865
  %899 = vst.msk [vmem:[%s4 + $0x8] sm:$0xf] %vm896, %v866
  %900 = vst.msk [vmem:[%s4 + $0xc] sm:$0xf] %vm896, %v867
  %901 = vst.msk [vmem:[%s4 + $0x10] sm:$0xf] %vm896, %v868
  %902 = vst.msk [vmem:[%s4 + $0x14] sm:$0xf] %vm896, %v869
  %903 = vst.msk [vmem:[%s4 + $0x18] sm:$0xf] %vm896, %v870
  %904 = vst.msk [vmem:[%s4 + $0x1c] sm:$0xf] %vm896, %v871
  %905 = vst.msk [vmem:[%s4 + $0x20] sm:$0xf] %vm896, %v872
  %906 = vst.msk [vmem:[%s4 + $0x24] sm:$0xf] %vm896, %v873
  %907 = vst.msk [vmem:[%s4 + $0x28] sm:$0xf] %vm896, %v874
  %908 = vst.msk [vmem:[%s4 + $0x2c] sm:$0xf] %vm896, %v875
  %909 = vst.msk [vmem:[%s4 + $0x30] sm:$0xf] %vm896, %v876
  %910 = vst.msk [vmem:[%s4 + $0x34] sm:$0xf] %vm896, %v877
  %911 = vst.msk [vmem:[%s4 + $0x38] sm:$0xf] %vm896, %v878
  %912 = vst.msk [vmem:[%s4 + $0x3c] sm:$0xf] %vm896, %v879
  // Predicated region
  $region18: #{tpu_custom_call.1} parent=0 // pred_check
    _
  $region19: #{tpu_custom_call.1} parent=0 // pred_check_branch
    %914 = sbr.rel (0) target = $region21
  $region20: #{tpu_custom_call.1} parent=0 // pred_region
    _
  $region21: #{tpu_custom_call.1} parent=0 // pred_fallthru
    _
  // Predicated region
  $region22: #{tpu_custom_call.1} parent=0 // pred_check
    _
  $region23: #{tpu_custom_call.1} parent=0 // pred_check_branch
    %916 = sbr.rel (0) target = $region25
  $region24: #{tpu_custom_call.1} parent=0 // pred_region
    _
  $region25: #{tpu_custom_call.1} parent=0 // pred_fallthru
    _

</llo_original>
